<compile_context>
chip_gen: v6e
topology: v6e:2x2x1
jax: 0.10.0
libtpu: 0.0.40
codegen_flags: <defaults>
</compile_context>

<pallas_src>
import jax
import jax.numpy as jnp
from jax.experimental import pallas as pl
from jax.experimental.pallas import tpu as pltpu

_POSE = 72
_BETA = 300
_TRANS = 3
_SCALE = 1
_RAW = _POSE + _BETA + _TRANS + _SCALE          # 376 valid features
_PADDED = 384                                    # 3 * 128 lanes -> unmasked stores


def _smpl_params_kernel(packed_ref, packed_out):
    # Single lane-dense identity copy of the packed SMPL parameter slab.
    packed_out[...] = packed_ref[...]


def optimization_smpl_forward(pose, beta, trans, scale):
    """Pallas equivalent of OptimizationSMPL.forward().

    Args:
      pose:  (1, 72)  float32
      beta:  (1, 300) float32
      trans: (1, 3)   float32
      scale: (1,)     float32
    Returns:
      (pose, beta, trans, scale) with identical shapes/dtypes.
    """
    dtype = pose.dtype
    # Pack everything into one lane-dense slab: (1, 384), multiple of 128 lanes.
    packed = jnp.concatenate(
        [
            pose,
            beta,
            trans,
            scale.reshape(1, 1),
            jnp.zeros((1, _PADDED - _RAW), dtype),   # pad 376 -> 384
        ],
        axis=1,
    )

    vmem_spec = pl.BlockSpec(memory_space=pltpu.MemorySpace.VMEM)

    packed_out = pl.pallas_call(
        _smpl_params_kernel,
        out_shape=jax.ShapeDtypeStruct((1, _PADDED), dtype),
        in_specs=[vmem_spec],
        out_specs=vmem_spec,
        # Output aliases the packed input: no fresh HBM output allocation.
        input_output_aliases={0: 0},
    )(packed)

    # Unpack outside the kernel (pure layout plumbing, fused by XLA).
    pose_o = packed_out[:, :_POSE]
    beta_o = packed_out[:, _POSE:_POSE + _BETA]
    trans_o = packed_out[:, _POSE + _BETA:_POSE + _BETA + _TRANS]
    scale_o = packed_out[:, _RAW - 1:_RAW].reshape(1)
    return pose_o, beta_o, trans_o, scale_o


def init_params(key):
    """Deterministic parameter init.

    The PyTorch module initializes pose/beta/trans to exact zeros and scale
    to 1.0. We add a tiny deterministic perturbation from PRNGKey(0) so the
    kernel's pass-through is verifiable against non-trivial data.
    """
    k_pose, k_beta, k_trans, k_scale = jax.random.split(key, 4)
    pose = jnp.zeros((1, _POSE), jnp.float32) + 0.01 * jax.random.normal(
        k_pose, (1, _POSE), jnp.float32)
    beta = jnp.zeros((1, _BETA), jnp.float32) + 0.01 * jax.random.normal(
        k_beta, (1, _BETA), jnp.float32)
    trans = jnp.zeros((1, _TRANS), jnp.float32) + 0.01 * jax.random.normal(
        k_trans, (1, _TRANS), jnp.float32)
    scale = jnp.ones((1,), jnp.float32) + 0.01 * jax.random.normal(
        k_scale, (1,), jnp.float32)
    return pose, beta, trans, scale


if __name__ == "__main__":
    key = jax.random.PRNGKey(0)
    pose, beta, trans, scale = init_params(key)

    fwd = jax.jit(optimization_smpl_forward)
    out = fwd(pose, beta, trans, scale)
    out = jax.block_until_ready(out)
    pose_o, beta_o, trans_o, scale_o = out

    # Verify exact pass-through semantics (forward returns the parameters).
    assert pose_o.shape == (1, 72) and pose_o.dtype == jnp.float32
    assert beta_o.shape == (1, 300) and beta_o.dtype == jnp.float32
    assert trans_o.shape == (1, 3) and trans_o.dtype == jnp.float32
    assert scale_o.shape == (1,) and scale_o.dtype == jnp.float32
    assert bool(jnp.array_equal(pose_o, pose))
    assert bool(jnp.array_equal(beta_o, beta))
    assert bool(jnp.array_equal(trans_o, trans))
    assert bool(jnp.array_equal(scale_o, scale))

    print("KERNEL_OK")
</pallas_src>

<mosaic_0001>
module attributes {stable_mosaic.version = 11 : i64} {
  func.func @_smpl_params_kernel(%arg0: memref<1x384xf32, #tpu.memory_space<vmem>>, %arg1: memref<1x384xf32, #tpu.memory_space<vmem>>) attributes {dimension_semantics = [], scalar_prefetch = 0 : i64, scratch_operands = 0 : i64, tpu.core_type = #tpu.core_type<tc>} {
    %c0 = arith.constant 0 : index
    %c0_0 = arith.constant 0 : index
    %0 = vector.load %arg0[%c0, %c0_0] : memref<1x384xf32, #tpu.memory_space<vmem>>, vector<1x384xf32>
    %c0_1 = arith.constant 0 : index
    %c0_2 = arith.constant 0 : index
    %1 = vector.load %arg1[%c0_1, %c0_2] : memref<1x384xf32, #tpu.memory_space<vmem>>, vector<1x384xf32>
    tpu.vector_store %arg1[%c0_1, %c0_2], %0 {strides = array<i32>} : memref<1x384xf32, #tpu.memory_space<vmem>>, vector<1x384xf32>,
    return
  }
}

</mosaic_0001>

<llo_original>
// kernel: optimization_smpl_forward.1
$region0: #{optimization_smpl_forward.1}
  #allocation0 [shape = 'u32[]', space=smem, size = 0x4, offset = 0x4, fixed_abs, tag = 'smem constant byte address 0x4 - core index']
  #allocation1 [shape = 'u32[144,128]{1,0:T(1,128)}', space=vmem, size = 0x12000, scoped, tag = 'internal scratch']
  %s0 = inlined_call_operand.vmem [shape: f32[1,384], index: 0, kind: input, shape index: {}, may-alias: {0,1}]
  %s1 = inlined_call_operand.vmem [shape: f32[1,384], index: 1, kind: output, shape index: {}, may-alias: {0,1}]
  %s2 = sld [smem:[#allocation0]]
  $region14: #{optimization_smpl_forward.1} parent=0
    _
  %s4 = ssub.s32 1, %s2
  %s5 = scalar_select 0, %s4, %s2
  // Predicated region
  $region2: #{optimization_smpl_forward.1} parent=0 // pred_check
    _
  $region3: #{optimization_smpl_forward.1} parent=0 // pred_check_branch
    %7 = sbr.rel (0) target = $region5
  $region4: #{optimization_smpl_forward.1} parent=0 // pred_region
    _
  $region5: #{optimization_smpl_forward.1} parent=0 // pred_fallthru
    _
  %v8 = vld [vmem:[%s0] sm:$0x7]
  %v9 = vlaneseq
  %vm10 = vcmp.ge.s32.totalorder %v9, 0
  %vm11 = vcmp.lt.s32.totalorder %v9, 384
  %vm12 = vmand %vm10, %vm11
  %13 = vst.msk [vmem:[%s1] sm:$0x7] %vm12, %v8
  // Predicated region
  $region6: #{optimization_smpl_forward.1} parent=0 // pred_check
    _
  $region7: #{optimization_smpl_forward.1} parent=0 // pred_check_branch
    %15 = sbr.rel (0) target = $region9
  $region8: #{optimization_smpl_forward.1} parent=0 // pred_region
    _
  $region9: #{optimization_smpl_forward.1} parent=0 // pred_fallthru
    _
  // Predicated region
  $region10: #{optimization_smpl_forward.1} parent=0 // pred_check
    _
  $region11: #{optimization_smpl_forward.1} parent=0 // pred_check_branch
    %17 = sbr.rel (0) target = $region13
  $region12: #{optimization_smpl_forward.1} parent=0 // pred_region
    _
  $region13: #{optimization_smpl_forward.1} parent=0 // pred_fallthru
    _

</llo_original>
